<compile_context>
chip_gen: v6e
topology: v6e:2x2x1
jax: 0.10.0
libtpu: 0.0.40
codegen_flags: <defaults>
</compile_context>

<pallas_src>
import functools

import numpy as np
import jax
import jax.numpy as jnp
from jax import lax
from jax.experimental import pallas as pl
from jax.experimental.pallas import tpu as pltpu


def _round_up(x: int, m: int) -> int:
    return ((x + m - 1) // m) * m


# ---------------------------------------------------------------------------
# Kernel
# ---------------------------------------------------------------------------
def _image_projection_kernel(x_ref, wt_ref, b_ref, g_ref, beta_ref, o_ref,
                             acc_ref, *, eps: float, groups: int, c: int):
    k = pl.program_id(2)

    @pl.when(k == 0)
    def _():
        acc_ref[...] = jnp.zeros_like(acc_ref)

    # (tb, tk) @ (tk, g*C) -> f32 accumulator on the MXU
    acc_ref[...] += jnp.dot(x_ref[...], wt_ref[...],
                            preferred_element_type=jnp.float32)

    @pl.when(k == pl.num_programs(2) - 1)
    def _():
        # Epilogue: bias add + per-group LayerNorm over the C lane axis, all f32.
        y = acc_ref[...] + b_ref[...]            # (tb, g*C)
        gamma = g_ref[...]                       # (1, C)
        beta = beta_ref[...]                     # (1, C)
        for gi in range(groups):                 # static, tiny trip count (<= N)
            lo, hi = gi * c, (gi + 1) * c        # 128-aligned static lane slices
            yg = y[:, lo:hi]
            mean = jnp.mean(yg, axis=-1, keepdims=True)
            xc = yg - mean
            var = jnp.mean(xc * xc, axis=-1, keepdims=True)
            inv = lax.rsqrt(var + eps)           # EUP rsqrt (off critical path)
            o_ref[:, lo:hi] = (xc * inv * gamma + beta).astype(o_ref.dtype)


# ---------------------------------------------------------------------------
# One-time parameter preparation (hoisted out of the forward path)
# ---------------------------------------------------------------------------
def prepare_image_projection_params(w, b, gamma, beta, *,
                                    compute_dtype=jnp.float32):
    """Transpose / cast / pad Linear+LayerNorm params ONCE at init.

    w:     (N*C, E) PyTorch Linear weight
    b:     (N*C,)   Linear bias
    gamma: (C,)     LayerNorm weight
    beta:  (C,)     LayerNorm bias
    Returns (wt, b2, g2, beta2) ready for image_projection_forward.
    """
    w = jnp.asarray(w)
    NC, E = w.shape
    wt = w.T.astype(compute_dtype)                    # (E, N*C), MXU-friendly
    Ep = _round_up(max(E, 128), 128)
    if Ep != E:                                       # zero-pad reduction dim
        wt = jnp.pad(wt, ((0, Ep - E), (0, 0)))
    b2 = jnp.asarray(b, jnp.float32).reshape(1, NC)   # bias/LN params stay f32
    g2 = jnp.asarray(gamma, jnp.float32).reshape(1, -1)
    beta2 = jnp.asarray(beta, jnp.float32).reshape(1, -1)
    return wt, b2, g2, beta2


# ---------------------------------------------------------------------------
# Tile selection (keeps per-step VMEM under the v5e default scoped budget)
# ---------------------------------------------------------------------------
def _select_tiles(B, Ep, N, C, in_bytes, out_bytes,
                  batch_tile, k_tile, groups_per_block,
                  budget=12 * 1024 * 1024):
    sub = {4: 8, 2: 16, 1: 32}.get(in_bytes, 8)       # dtype sublane minimum
    if batch_tile is None:
        cap = 256 if B >= 256 else 128                # 256-wide MXU on v6e/v7x
        tb = min(cap, _round_up(B, sub))
    else:
        tb = batch_tile
    assert tb % sub == 0, "batch_tile must be a multiple of the sublane minimum"
    Bp = _round_up(B, tb)
    nb = Bp // tb

    divisors = [d for d in range(N, 0, -1) if N % d == 0]
    if groups_per_block is not None:
        g_candidates = [groups_per_block]
    elif nb == 1 and N >= 2:
        # keep >= 2 column blocks so v7x megacore has a parallel axis to shard
        g_candidates = [d for d in divisors if d <= N // 2] or divisors
    else:
        g_candidates = divisors

    if k_tile is not None:
        assert Ep % k_tile == 0 and k_tile % 128 == 0
        tk_candidates = [k_tile]
    else:
        tk_candidates = [d for d in range(Ep, 0, -128) if Ep % d == 0]

    def fits(tk, g):
        gC = g * C
        bytes_ = (2 * tb * tk * in_bytes        # x block, double buffered
                  + 2 * tk * gC * in_bytes      # weight block, double buffered
                  + 2 * gC * 4 + 4 * C * 4      # bias / gamma / beta
                  + tb * gC * 4                 # f32 accumulator scratch
                  + 2 * tb * gC * out_bytes)    # output block, double buffered
        return bytes_ <= budget

    for g in g_candidates:
        for tk in tk_candidates:
            if fits(tk, g):
                return tb, Bp, g, tk
    return tb, Bp, g_candidates[-1], tk_candidates[-1]   # fallback: smallest


# ---------------------------------------------------------------------------
# Forward
# ---------------------------------------------------------------------------
def image_projection_forward(x, wt, b2, g2, beta2, *,
                             num_image_text_embeds: int,
                             eps: float = 1e-5,
                             batch_tile: int | None = None,
                             k_tile: int | None = None,
                             groups_per_block: int | None = None,
                             out_dtype=None) -> jnp.ndarray:
    """x: (B, E) image embeddings; params from prepare_image_projection_params."""
    B, E = x.shape
    Ep, NC = wt.shape
    N = num_image_text_embeds
    C = NC // N
    assert N * C == NC, "weight out-dim not divisible by num_image_text_embeds"
    assert C % 128 == 0, "cross_attention_dim must be a multiple of 128"
    assert E <= Ep and Ep % 128 == 0, "weight not prepared for this input dim"

    out_dtype = out_dtype if out_dtype is not None else x.dtype
    compute_dtype = wt.dtype
    if x.dtype != compute_dtype:
        x = x.astype(compute_dtype)

    in_bytes = np.dtype(compute_dtype).itemsize
    out_bytes = np.dtype(out_dtype).itemsize
    tb, Bp, g, tk = _select_tiles(B, Ep, N, C, in_bytes, out_bytes,
                                  batch_tile, k_tile, groups_per_block)

    if Bp != B or Ep != E:
        x = jnp.pad(x, ((0, Bp - B), (0, Ep - E)))     # zero pad: no effect on matmul

    gC = g * C
    grid = (Bp // tb, N // g, Ep // tk)

    kern = functools.partial(_image_projection_kernel, eps=eps, groups=g, c=C)

    out2d = pl.pallas_call(
        kern,
        out_shape=jax.ShapeDtypeStruct((Bp, NC), out_dtype),
        grid_spec=pltpu.PrefetchScalarGridSpec(
            num_scalar_prefetch=0,
            grid=grid,
            in_specs=[
                pl.BlockSpec((tb, tk), lambda i, j, k: (i, k)),   # x
                pl.BlockSpec((tk, gC), lambda i, j, k: (k, j)),   # W^T (pre-transposed)
                pl.BlockSpec((1, gC), lambda i, j, k: (0, j)),    # bias
                pl.BlockSpec((1, C), lambda i, j, k: (0, 0)),     # LN gamma
                pl.BlockSpec((1, C), lambda i, j, k: (0, 0)),     # LN beta
            ],
            out_specs=pl.BlockSpec((tb, gC), lambda i, j, k: (i, j)),
            scratch_shapes=[pltpu.VMEM((tb, gC), jnp.float32)],
        ),
        compiler_params=pltpu.CompilerParams(
            dimension_semantics=("parallel", "parallel", "arbitrary"),
        ),
    )(x, wt, b2, g2, beta2)

    return out2d[:B].reshape(B, N, C)


# ---------------------------------------------------------------------------
# Demo / correctness check
# ---------------------------------------------------------------------------
if __name__ == "__main__":
    # small shapes consistent with the module (defaults are E=C=1024, N=4)
    B = 8      # batch
    E = 256    # image_embed_dim
    C = 128    # cross_attention_dim
    N = 4      # num_image_text_embeds
    EPS = 1e-5

    key = jax.random.PRNGKey(0)
    kx, kw, kb, kg, kbt = jax.random.split(key, 5)
    x = jax.random.normal(kx, (B, E), dtype=jnp.float32)
    w = jax.random.normal(kw, (N * C, E), dtype=jnp.float32) * 0.02
    b = jax.random.normal(kb, (N * C,), dtype=jnp.float32) * 0.02
    gamma = 1.0 + 0.1 * jax.random.normal(kg, (C,), dtype=jnp.float32)
    beta = 0.1 * jax.random.normal(kbt, (C,), dtype=jnp.float32)

    # pure-JAX reference (matches the PyTorch module)
    ref = (x @ w.T + b).reshape(B, N, C)
    mu = ref.mean(-1, keepdims=True)
    var = ((ref - mu) ** 2).mean(-1, keepdims=True)
    ref = (ref - mu) / jnp.sqrt(var + EPS) * gamma + beta

    # f32 path: params transposed ONCE at init, not per forward call
    params_f32 = prepare_image_projection_params(w, b, gamma, beta,
                                                 compute_dtype=jnp.float32)
    out_f32 = image_projection_forward(x, *params_f32,
                                       num_image_text_embeds=N, eps=EPS)
    out_f32 = jax.block_until_ready(out_f32)
    assert out_f32.shape == (B, N, C)
    assert jnp.allclose(out_f32, ref, atol=1e-3, rtol=1e-3), "f32 mismatch vs reference"

    # bf16 weight/activation path (HBM traffic halved; f32 accumulation + f32 LN)
    params_bf16 = prepare_image_projection_params(w, b, gamma, beta,
                                                  compute_dtype=jnp.bfloat16)
    out_bf16 = image_projection_forward(x.astype(jnp.bfloat16), *params_bf16,
                                        num_image_text_embeds=N, eps=EPS,
                                        out_dtype=jnp.float32)
    out_bf16 = jax.block_until_ready(out_bf16)
    assert out_bf16.shape == (B, N, C)
    assert jnp.allclose(out_bf16, ref, atol=7.5e-2, rtol=7.5e-2), "bf16 mismatch vs reference"

    print("KERNEL_OK")
</pallas_src>

<mosaic_0001>
module attributes {stable_mosaic.version = 11 : i64} {
  func.func @_image_projection_kernel(%arg0: i32, %arg1: i32, %arg2: i32, %arg3: memref<8x256xf32, #tpu.memory_space<vmem>>, %arg4: memref<256x256xf32, #tpu.memory_space<vmem>>, %arg5: memref<1x256xf32, #tpu.memory_space<vmem>>, %arg6: memref<1x128xf32, #tpu.memory_space<vmem>>, %arg7: memref<1x128xf32, #tpu.memory_space<vmem>>, %arg8: memref<8x256xf32, #tpu.memory_space<vmem>>, %arg9: memref<8x256xf32, #tpu.memory_space<vmem>>) attributes {dimension_semantics = [#tpu.dimension_semantics<parallel>, #tpu.dimension_semantics<parallel>, #tpu.dimension_semantics<arbitrary>], iteration_bounds = array<i64: 1, 2, 1>, scalar_prefetch = 0 : i64, scratch_operands = 1 : i64, tpu.core_type = #tpu.core_type<tc>, window_params = [{transform_indices = @transform_0, window_bounds = array<i64: 8, 256>}, {transform_indices = @transform_1, window_bounds = array<i64: 256, 256>}, {transform_indices = @transform_2, window_bounds = array<i64: 1, 256>}, {pipeline_mode = #tpu.pipeline_mode<synchronous>, transform_indices = @transform_3, window_bounds = array<i64: 1, 128>}, {pipeline_mode = #tpu.pipeline_mode<synchronous>, transform_indices = @transform_4, window_bounds = array<i64: 1, 128>}, {transform_indices = @transform_5, window_bounds = array<i64: 8, 256>}]} {
    %c0_i32 = arith.constant 0 : i32
    %0 = arith.cmpi eq, %arg2, %c0_i32 : i32
    %1 = arith.extui %0 : i1 to i32
    %c0_i32_0 = arith.constant 0 : i32
    %2 = arith.cmpi ne, %1, %c0_i32_0 : i32
    scf.if %2 {
      %cst_10 = arith.constant 0.000000e+00 : f32
      %12 = vector.broadcast %cst_10 : f32 to vector<8x256xf32>
      %c0_11 = arith.constant 0 : index
      %c0_12 = arith.constant 0 : index
      %13 = vector.load %arg9[%c0_11, %c0_12] : memref<8x256xf32, #tpu.memory_space<vmem>>, vector<8x256xf32>
      tpu.vector_store %arg9[%c0_11, %c0_12], %12 {strides = array<i32>} : memref<8x256xf32, #tpu.memory_space<vmem>>, vector<8x256xf32>,
    } else {
    }
    %c0 = arith.constant 0 : index
    %c0_1 = arith.constant 0 : index
    %3 = vector.load %arg9[%c0, %c0_1] : memref<8x256xf32, #tpu.memory_space<vmem>>, vector<8x256xf32>
    %c0_2 = arith.constant 0 : index
    %c0_3 = arith.constant 0 : index
    %4 = vector.load %arg3[%c0_2, %c0_3] : memref<8x256xf32, #tpu.memory_space<vmem>>, vector<8x256xf32>
    %c0_4 = arith.constant 0 : index
    %c0_5 = arith.constant 0 : index
    %5 = vector.load %arg4[%c0_4, %c0_5] : memref<256x256xf32, #tpu.memory_space<vmem>>, vector<256x256xf32>
    %cst = arith.constant dense<0.000000e+00> : vector<8x256xf32>
    %6 = tpu.matmul %4, %5, %cst {dimension_numbers = #tpu.dot_dimension_numbers<[1], [0], [0], [1], [0, 0, 1, 1], [], []>} : vector<8x256xf32>, vector<256x256xf32>, vector<8x256xf32> -> vector<8x256xf32>
    %7 = arith.addf %3, %6 : vector<8x256xf32>
    %c0_6 = arith.constant 0 : index
    %c0_7 = arith.constant 0 : index
    %8 = vector.load %arg9[%c0_6, %c0_7] : memref<8x256xf32, #tpu.memory_space<vmem>>, vector<8x256xf32>
    tpu.vector_store %arg9[%c0_6, %c0_7], %7 {strides = array<i32>} : memref<8x256xf32, #tpu.memory_space<vmem>>, vector<8x256xf32>,
    %c0_i32_8 = arith.constant 0 : i32
    %9 = arith.cmpi eq, %arg2, %c0_i32_8 : i32
    %10 = arith.extui %9 : i1 to i32
    %c0_i32_9 = arith.constant 0 : i32
    %11 = arith.cmpi ne, %10, %c0_i32_9 : i32
    scf.if %11 {
      %c0_10 = arith.constant 0 : index
      %c0_11 = arith.constant 0 : index
      %12 = vector.load %arg9[%c0_10, %c0_11] : memref<8x256xf32, #tpu.memory_space<vmem>>, vector<8x256xf32>
      %c0_12 = arith.constant 0 : index
      %c0_13 = arith.constant 0 : index
      %13 = vector.load %arg5[%c0_12, %c0_13] : memref<1x256xf32, #tpu.memory_space<vmem>>, vector<1x256xf32>
      %14 = vector.broadcast %13 : vector<1x256xf32> to vector<8x256xf32>
      %15 = arith.addf %12, %14 : vector<8x256xf32>
      %c0_14 = arith.constant 0 : index
      %c0_15 = arith.constant 0 : index
      %16 = vector.load %arg6[%c0_14, %c0_15] : memref<1x128xf32, #tpu.memory_space<vmem>>, vector<1x128xf32>
      %c0_16 = arith.constant 0 : index
      %c0_17 = arith.constant 0 : index
      %17 = vector.load %arg7[%c0_16, %c0_17] : memref<1x128xf32, #tpu.memory_space<vmem>>, vector<1x128xf32>
      %18 = vector.extract_strided_slice %15 {offsets = [0, 0], sizes = [8, 128], strides = [1, 1]} : vector<8x256xf32> to vector<8x128xf32>
      %cst_18 = arith.constant dense<0.000000e+00> : vector<8xf32>
      %19 = vector.multi_reduction <add>, %18, %cst_18 [1] : vector<8x128xf32> to vector<8xf32>
      %20 = vector.shape_cast %19 : vector<8xf32> to vector<8x1xf32>
      %cst_19 = arith.constant 1.280000e+02 : f32
      %21 = vector.broadcast %cst_19 : f32 to vector<8x1xf32>
      %22 = arith.divf %20, %21 : vector<8x1xf32>
      %23 = vector.broadcast %22 : vector<8x1xf32> to vector<8x128xf32>
      %24 = arith.subf %18, %23 : vector<8x128xf32>
      %25 = arith.mulf %24, %24 : vector<8x128xf32>
      %cst_20 = arith.constant dense<0.000000e+00> : vector<8xf32>
      %26 = vector.multi_reduction <add>, %25, %cst_20 [1] : vector<8x128xf32> to vector<8xf32>
      %27 = vector.shape_cast %26 : vector<8xf32> to vector<8x1xf32>
      %cst_21 = arith.constant 1.280000e+02 : f32
      %28 = vector.broadcast %cst_21 : f32 to vector<8x1xf32>
      %29 = arith.divf %27, %28 : vector<8x1xf32>
      %cst_22 = arith.constant 9.99999974E-6 : f32
      %30 = vector.broadcast %cst_22 : f32 to vector<8x1xf32>
      %31 = arith.addf %29, %30 : vector<8x1xf32>
      %32 = math.rsqrt %31 : vector<8x1xf32>
      %33 = vector.broadcast %32 : vector<8x1xf32> to vector<8x128xf32>
      %34 = arith.mulf %24, %33 : vector<8x128xf32>
      %35 = vector.broadcast %16 : vector<1x128xf32> to vector<8x128xf32>
      %36 = arith.mulf %34, %35 : vector<8x128xf32>
      %37 = vector.broadcast %17 : vector<1x128xf32> to vector<8x128xf32>
      %38 = arith.addf %36, %37 : vector<8x128xf32>
      %c0_23 = arith.constant 0 : index
      %c0_24 = arith.constant 0 : index
      %39 = vector.load %arg8[%c0_23, %c0_24] : memref<8x256xf32, #tpu.memory_space<vmem>>, vector<8x128xf32>
      tpu.vector_store %arg8[%c0_23, %c0_24], %38 {strides = array<i32>} : memref<8x256xf32, #tpu.memory_space<vmem>>, vector<8x128xf32>,
      %40 = vector.extract_strided_slice %15 {offsets = [0, 128], sizes = [8, 128], strides = [1, 1]} : vector<8x256xf32> to vector<8x128xf32>
      %cst_25 = arith.constant dense<0.000000e+00> : vector<8xf32>
      %41 = vector.multi_reduction <add>, %40, %cst_25 [1] : vector<8x128xf32> to vector<8xf32>
      %42 = vector.shape_cast %41 : vector<8xf32> to vector<8x1xf32>
      %cst_26 = arith.constant 1.280000e+02 : f32
      %43 = vector.broadcast %cst_26 : f32 to vector<8x1xf32>
      %44 = arith.divf %42, %43 : vector<8x1xf32>
      %45 = vector.broadcast %44 : vector<8x1xf32> to vector<8x128xf32>
      %46 = arith.subf %40, %45 : vector<8x128xf32>
      %47 = arith.mulf %46, %46 : vector<8x128xf32>
      %cst_27 = arith.constant dense<0.000000e+00> : vector<8xf32>
      %48 = vector.multi_reduction <add>, %47, %cst_27 [1] : vector<8x128xf32> to vector<8xf32>
      %49 = vector.shape_cast %48 : vector<8xf32> to vector<8x1xf32>
      %cst_28 = arith.constant 1.280000e+02 : f32
      %50 = vector.broadcast %cst_28 : f32 to vector<8x1xf32>
      %51 = arith.divf %49, %50 : vector<8x1xf32>
      %cst_29 = arith.constant 9.99999974E-6 : f32
      %52 = vector.broadcast %cst_29 : f32 to vector<8x1xf32>
      %53 = arith.addf %51, %52 : vector<8x1xf32>
      %54 = math.rsqrt %53 : vector<8x1xf32>
      %55 = vector.broadcast %54 : vector<8x1xf32> to vector<8x128xf32>
      %56 = arith.mulf %46, %55 : vector<8x128xf32>
      %57 = vector.broadcast %16 : vector<1x128xf32> to vector<8x128xf32>
      %58 = arith.mulf %56, %57 : vector<8x128xf32>
      %59 = vector.broadcast %17 : vector<1x128xf32> to vector<8x128xf32>
      %60 = arith.addf %58, %59 : vector<8x128xf32>
      %c0_30 = arith.constant 0 : index
      %c128 = arith.constant 128 : index
      %61 = vector.load %arg8[%c0_30, %c128] : memref<8x256xf32, #tpu.memory_space<vmem>>, vector<8x128xf32>
      tpu.vector_store %arg8[%c0_30, %c128], %60 {strides = array<i32>} : memref<8x256xf32, #tpu.memory_space<vmem>>, vector<8x128xf32>,
    } else {
    }
    return
  }
  func.func @transform_0(%arg0: i32, %arg1: i32, %arg2: i32) -> (i32, i32) {
    %c0_i32 = arith.constant 0 : i32
    return %arg0, %arg2 : i32, i32
  }
  func.func @transform_1(%arg0: i32, %arg1: i32, %arg2: i32) -> (i32, i32) {
    %c0_i32 = arith.constant 0 : i32
    return %arg2, %arg1 : i32, i32
  }
  func.func @transform_2(%arg0: i32, %arg1: i32, %arg2: i32) -> (i32, i32) {
    %c0_i32 = arith.constant 0 : i32
    %c0_i32_0 = arith.constant 0 : i32
    return %c0_i32, %arg1 : i32, i32
  }
  func.func @transform_3(%arg0: i32, %arg1: i32, %arg2: i32) -> (i32, i32) {
    %c0_i32 = arith.constant 0 : i32
    %c0_i32_0 = arith.constant 0 : i32
    %c0_i32_1 = arith.constant 0 : i32
    return %c0_i32, %c0_i32_0 : i32, i32
  }
  func.func @transform_4(%arg0: i32, %arg1: i32, %arg2: i32) -> (i32, i32) {
    %c0_i32 = arith.constant 0 : i32
    %c0_i32_0 = arith.constant 0 : i32
    %c0_i32_1 = arith.constant 0 : i32
    return %c0_i32, %c0_i32_0 : i32, i32
  }
  func.func @transform_5(%arg0: i32, %arg1: i32, %arg2: i32) -> (i32, i32) {
    %c0_i32 = arith.constant 0 : i32
    return %arg0, %arg1 : i32, i32
  }
}

</mosaic_0001>

<llo_original>
// kernel: tpu_custom_call.1
$region0: #{tpu_custom_call.1}
  #allocation0 [shape = 'u32[]', space=smem, size = 0x4, offset = 0x4, fixed_abs, tag = 'smem constant byte address 0x4 - core index']
  #allocation1 [shape = 'u32[144,128]{1,0:T(1,128)}', space=vmem, size = 0x12000, scoped, tag = 'internal scratch']
  #allocation2 [shape = 'f32[8,256]{1,0:T(8,128)}', space=vmem, size = 0x2000, scoped, tag = 'scratch operand']
  %s0 = inlined_call_operand.hbm [shape: f32[8,256], index: 0, kind: input, shape index: {}]
  %s1 = inlined_call_operand.hbm [shape: f32[256,512], index: 1, kind: input, shape index: {}]
  %s2 = inlined_call_operand.hbm [shape: f32[1,512], index: 2, kind: input, shape index: {}]
  %s3 = inlined_call_operand.vmem [shape: f32[1,128], index: 3, kind: input, shape index: {}]
  %s4 = inlined_call_operand.vmem [shape: f32[1,128], index: 4, kind: input, shape index: {}]
  %s5 = inlined_call_operand.hbm [shape: f32[8,512], index: 5, kind: output, shape index: {}]
  %s6 = sld [smem:[#allocation0]]
  $region73: #{tpu_custom_call.1} parent=0
    _
  %s8 = ssub.s32 1, %s6
  %s9 = scalar_select 0, %s8, %s6
  $region1: #{tpu_custom_call.1} parent=0
    #allocation3 [shape = 'u8[8192]{0}', space=vmem, size = 0x2000, scoped, tag = 'input window, operand 0, single buffered']
    #allocation4 [shape = 's32[2]{0}', space=sflag, size = 0x8, scoped, tag = 'scoped memory for tpu_custom_call.1']
    #allocation5 [shape = 's32[2]{0}', space=sflag, size = 0x8, scoped, tag = 'scoped memory for tpu_custom_call.1']
    #allocation6 [shape = 'u8[524288]{0}', space=vmem, size = 0x80000, scoped, tag = 'input window, operand 1']
    #allocation7 [shape = 's32[2]{0}', space=sflag, size = 0x8, scoped, tag = 'scoped memory for tpu_custom_call.1']
    #allocation8 [shape = 'u8[2048]{0}', space=vmem, size = 0x800, scoped, tag = 'input window, operand 2']
    #allocation9 [shape = 'u8[16384]{0}', space=vmem, size = 0x4000, scoped, tag = 'output window, operand 0']
    %10 = vsyncpa [#allocation4], 0
    %11 = vsyncpa [#allocation7], 0
    %s12 = scalar_lea.sflag [#allocation7], 1
    %13 = vsyncpa %s12, 0
    %14 = vsyncpa [#allocation5], 0
    %s15 = scalar_lea.sflag [#allocation5], 1
    %16 = vsyncpa %s15, 0
    loop: start=0, step=1, limit=4
    $region2: #{tpu_custom_call.1} parent=1 // loop_pre_header
      _
    $region3: #{tpu_custom_call.1} parent=1 // loop_header
      %s18 = sphi 0, %s22
      %p19 = scmp.ge.s32.totalorder %s18, 4
      %s25 = sphi 0, %s44
      %s26 = sphi 0, %s40
      %s27 = sphi 0, %s36
      %s28 = sphi 0, %s25
      %s29 = sphi 0, %s26
      %s30 = sphi 0, %s27
      %s31 = sphi 0, %s28
      %s32 = sphi 0, %s29
      %s33 = sphi 0, %s30
      %s49 = sphi 0, %s51
      %s52 = sphi 0, %s49
      %s53 = sphi 0, %s52
      %s69 = sphi 0, %s53
      %s77 = sphi 0, %s79
      %s80 = sphi 0, %s77
      %s81 = sphi 0, %s80
      %s97 = sphi 0, %s81
      %s103 = sphi 0, %s105
      %s106 = sphi 0, %s103
      %s107 = sphi 0, %s106
      %s123 = sphi 0, %s107
      %s127 = sphi 0, %s127
      %s129 = sphi 0, %s127
      %s130 = sphi 0, %s129
      %s144 = sphi 0, %s130
      %s148 = sphi 0, %s148
      %s150 = sphi 0, %s148
      %s151 = sphi 0, %s150
      %s165 = sphi 0, %s151
      %s173 = sphi 0, %s175
      %s176 = sphi 0, %s173
      %s177 = sphi 0, %s176
      %s193 = sphi 0, %s177
    $region4: #{tpu_custom_call.1} parent=1 // loop_header_branch
      %21 = sbr.rel (%p19) target = $region8
    $region5: #{tpu_custom_call.1} parent=1 // loop_body
      %s23 = ssub.s32 %s18, 1
      %s24 = ssub.s32 %s18, 2
      %s34 = sadd.s32 1, %s27
      %p35 = scmp.ge.s32.totalorder %s34, 1
      %s36 = scalar_select %p35, 0, %s34
      %s37 = sadd.s32 1, %s26
      %s38 = scalar_select %p35, %s37, %s26
      %p39 = scmp.ge.s32.totalorder %s38, 2
      %s40 = scalar_select %p39, 0, %s38
      %s41 = sadd.s32 1, %s25
      %s42 = scalar_select %p39, %s41, %s25
      %p43 = scmp.ge.s32.totalorder %s42, 1
      %s44 = scalar_select %p43, 0, %s42
      %s45 = ssub.s32 %s25, %s44
      %s46 = ssub.s32 %s27, %s36
      %s47 = sor.u32 %s45, %s46
      %p48 = scmp.eq.s32.totalorder %s47, 0
      %s50 = sadd.s32 %s49, 1
      %s51 = scalar_select %p48, %s49, %s50
      %p54 = pneg %p48
      %p55 = scmp.eq.s32.totalorder %s18, 1
      %p56 = por %p54, %p55
      %p57 = scmp.ne.s32.totalorder %s49, %s52
      %p58 = scmp.eq.s32.totalorder %s18, 0
      %p59 = por %p57, %p58
      %p60 = scmp.ne.s32.totalorder %s49, %s52
      %p61 = scmp.eq.s32.totalorder %s23, 1
      %p62 = por %p60, %p61
      %p63 = scmp.ne.s32.totalorder %s52, %s53
      %p64 = scmp.eq.s32.totalorder %s23, 0
      %p65 = por %p63, %p64
      %p66 = scmp.ne.s32.totalorder %s52, %s53
      %p67 = scmp.eq.s32.totalorder %s24, 1
      %p68 = por %p66, %p67
      %p70 = scmp.ne.s32.totalorder %s53, %s69
      %p71 = scmp.eq.s32.totalorder %s24, 0
      %p72 = por %p70, %p71
      %s73 = ssub.s32 %s27, %s36
      %s74 = ssub.s32 %s26, %s40
      %s75 = sor.u32 %s73, %s74
      %p76 = scmp.eq.s32.totalorder %s75, 0
      %s78 = sadd.s32 %s77, 1
      %s79 = scalar_select %p76, %s77, %s78
      %p82 = pneg %p76
      %p83 = scmp.eq.s32.totalorder %s18, 1
      %p84 = por %p82, %p83
      %p85 = scmp.ne.s32.totalorder %s77, %s80
      %p86 = scmp.eq.s32.totalorder %s18, 0
      %p87 = por %p85, %p86
      %p88 = scmp.ne.s32.totalorder %s77, %s80
      %p89 = scmp.eq.s32.totalorder %s23, 1
      %p90 = por %p88, %p89
      %p91 = scmp.ne.s32.totalorder %s80, %s81
      %p92 = scmp.eq.s32.totalorder %s23, 0
      %p93 = por %p91, %p92
      %p94 = scmp.ne.s32.totalorder %s80, %s81
      %p95 = scmp.eq.s32.totalorder %s24, 1
      %p96 = por %p94, %p95
      %p98 = scmp.ne.s32.totalorder %s81, %s97
      %p99 = scmp.eq.s32.totalorder %s24, 0
      %p100 = por %p98, %p99
      %s101 = ssub.s32 %s26, %s40
      %p102 = scmp.eq.s32.totalorder %s101, 0
      %s104 = sadd.s32 %s103, 1
      %s105 = scalar_select %p102, %s103, %s104
      %p108 = pneg %p102
      %p109 = scmp.eq.s32.totalorder %s18, 1
      %p110 = por %p108, %p109
      %p111 = scmp.ne.s32.totalorder %s103, %s106
      %p112 = scmp.eq.s32.totalorder %s18, 0
      %p113 = por %p111, %p112
      %p114 = scmp.ne.s32.totalorder %s103, %s106
      %p115 = scmp.eq.s32.totalorder %s23, 1
      %p116 = por %p114, %p115
      %p117 = scmp.ne.s32.totalorder %s106, %s107
      %p118 = scmp.eq.s32.totalorder %s23, 0
      %p119 = por %p117, %p118
      %p120 = scmp.ne.s32.totalorder %s106, %s107
      %p121 = scmp.eq.s32.totalorder %s24, 1
      %p122 = por %p120, %p121
      %p124 = scmp.ne.s32.totalorder %s107, %s123
      %p125 = scmp.eq.s32.totalorder %s24, 0
      %p126 = por %p124, %p125
      %s128 = sadd.s32 %s127, 1
      %p131 = scmp.eq.s32.totalorder %s18, 1
      %p132 = scmp.ne.s32.totalorder %s127, %s129
      %p133 = scmp.eq.s32.totalorder %s18, 0
      %p134 = por %p132, %p133
      %p135 = scmp.ne.s32.totalorder %s127, %s129
      %p136 = scmp.eq.s32.totalorder %s23, 1
      %p137 = por %p135, %p136
      %p138 = scmp.ne.s32.totalorder %s129, %s130
      %p139 = scmp.eq.s32.totalorder %s23, 0
      %p140 = por %p138, %p139
      %p141 = scmp.ne.s32.totalorder %s129, %s130
      %p142 = scmp.eq.s32.totalorder %s24, 1
      %p143 = por %p141, %p142
      %p145 = scmp.ne.s32.totalorder %s130, %s144
      %p146 = scmp.eq.s32.totalorder %s24, 0
      %p147 = por %p145, %p146
      %s149 = sadd.s32 %s148, 1
      %p152 = scmp.eq.s32.totalorder %s18, 1
      %p153 = scmp.ne.s32.totalorder %s148, %s150
      %p154 = scmp.eq.s32.totalorder %s18, 0
      %p155 = por %p153, %p154
      %p156 = scmp.ne.s32.totalorder %s148, %s150
      %p157 = scmp.eq.s32.totalorder %s23, 1
      %p158 = por %p156, %p157
      %p159 = scmp.ne.s32.totalorder %s150, %s151
      %p160 = scmp.eq.s32.totalorder %s23, 0
      %p161 = por %p159, %p160
      %p162 = scmp.ne.s32.totalorder %s150, %s151
      %p163 = scmp.eq.s32.totalorder %s24, 1
      %p164 = por %p162, %p163
      %p166 = scmp.ne.s32.totalorder %s151, %s165
      %p167 = scmp.eq.s32.totalorder %s24, 0
      %p168 = por %p166, %p167
      %s169 = ssub.s32 %s25, %s44
      %s170 = ssub.s32 %s26, %s40
      %s171 = sor.u32 %s169, %s170
      %p172 = scmp.eq.s32.totalorder %s171, 0
      %s174 = sadd.s32 %s173, 1
      %s175 = scalar_select %p172, %s173, %s174
      %p178 = pneg %p172
      %p179 = scmp.eq.s32.totalorder %s18, 1
      %p180 = por %p178, %p179
      %p181 = scmp.ne.s32.totalorder %s173, %s176
      %p182 = scmp.eq.s32.totalorder %s18, 0
      %p183 = por %p181, %p182
      %p184 = scmp.ne.s32.totalorder %s173, %s176
      %p185 = scmp.eq.s32.totalorder %s23, 1
      %p186 = por %p184, %p185
      %p187 = scmp.ne.s32.totalorder %s176, %s177
      %p188 = scmp.eq.s32.totalorder %s23, 0
      %p189 = por %p187, %p188
      %p190 = scmp.ne.s32.totalorder %s176, %s177
      %p191 = scmp.eq.s32.totalorder %s24, 1
      %p192 = por %p190, %p191
      %p194 = scmp.ne.s32.totalorder %s177, %s193
      %p195 = scmp.eq.s32.totalorder %s24, 0
      %p196 = por %p194, %p195
      %p197 = scmp.le.s32.totalorder 1, %s18
      %p198 = scmp.lt.s32.totalorder %s18, 3
      %p199 = pnand %p197, %p198
      %p200 = pneg %p199
      // Predicated region
      $region9: #{tpu_custom_call.1} parent=5 // pred_check
        _
      $region10: #{tpu_custom_call.1} parent=5 // pred_check_branch
        %202 = sbr.rel (%p199) target = $region12
      $region11: #{tpu_custom_call.1} parent=5 // pred_region
        %s203 = ssub.s32 %s18, 1
        // Predicated region
        $region13: #{tpu_custom_call.1} parent=11 // pred_check
          %p204 = pneg %p65
        $region14: #{tpu_custom_call.1} parent=11 // pred_check_branch
          %206 = sbr.rel (%p204) target = $region16
        $region15: #{tpu_custom_call.1} parent=11 // pred_region
          %s207 = smul.u32 2, %s30
          %s209 = ssub.s32 256, 256
          %210 = vsyncadd [#allocation4], %s209
          %s211 = smul.addr %s28, 2
          %s212 = sadd.s32 %s207, %s211
          %s213 = smul.addr %s212, 128
          %s214 = scalar_lea.hbm %s0, %s213
          %s216 = sshll.u32 [#allocation3], 4
          %s217 = int_to_ptr.vmem [resolvable:$true] %s216
          %219 = dma.hbm_to_vmem [thread:$0]  %s214, 256, %s217, [#allocation4]
        $region16: #{tpu_custom_call.1} parent=11 // pred_fallthru
          _
        // Predicated region
        $region17: #{tpu_custom_call.1} parent=11 // pred_check
          %p220 = pneg %p140
        $region18: #{tpu_custom_call.1} parent=11 // pred_check_branch
          %222 = sbr.rel (%p220) target = $region20
        $region19: #{tpu_custom_call.1} parent=11 // pred_region
          _
        $region20: #{tpu_custom_call.1} parent=11 // pred_fallthru
          _
        // Predicated region
        $region21: #{tpu_custom_call.1} parent=11 // pred_check
          %p223 = pneg %p161
        $region22: #{tpu_custom_call.1} parent=11 // pred_check_branch
          %225 = sbr.rel (%p223) target = $region24
        $region23: #{tpu_custom_call.1} parent=11 // pred_region
          _
        $region24: #{tpu_custom_call.1} parent=11 // pred_fallthru
          _
      $region12: #{tpu_custom_call.1} parent=5 // pred_fallthru
        _
      %p226 = scmp.lt.s32.totalorder %s18, 2
      // Predicated region
      $region25: #{tpu_custom_call.1} parent=5 // pred_check
        %p227 = pneg %p226
      $region26: #{tpu_custom_call.1} parent=5 // pred_check_branch
        %229 = sbr.rel (%p227) target = $region28
      $region27: #{tpu_custom_call.1} parent=5 // pred_region
        // Predicated region
        $region29: #{tpu_custom_call.1} parent=27 // pred_check
          %p230 = pneg %p87
        $region30: #{tpu_custom_call.1} parent=27 // pred_check_branch
          %232 = sbr.rel (%p230) target = $region32
        $region31: #{tpu_custom_call.1} parent=27 // pred_region
          %s233 = sand.u32 %s18, 1
          %s234 = scalar_lea.sflag [#allocation7], %s233
          %s235 = sand.u32 %s77, 1
          %s236 = smul.addr %s235, 512
          %s237 = scalar_lea.vmem [#allocation6], %s236
          %s238 = smul.u32 32, %s27
          %s239 = smul.u32 2, %s26
          %s241 = ssub.s32 8192, 8192
          %242 = vsyncadd %s234, %s241
          %s243 = smul.addr %s238, 4
          %s244 = sadd.s32 %s239, %s243
          %s245 = smul.addr %s244, 128
          %s246 = scalar_lea.hbm %s1, %s245
          %s247 = sshll.u32 %s237, 4
          %s248 = int_to_ptr.vmem [resolvable:$true] %s247
          %253 = dma.hbm_to_vmem [thread:$0]  %s246, 8192, %s248, %s234, 512, 256, 16
        $region32: #{tpu_custom_call.1} parent=27 // pred_fallthru
          _
        // Predicated region
        $region33: #{tpu_custom_call.1} parent=27 // pred_check
          %p254 = pneg %p113
        $region34: #{tpu_custom_call.1} parent=27 // pred_check_branch
          %256 = sbr.rel (%p254) target = $region36
        $region35: #{tpu_custom_call.1} parent=27 // pred_region
          %s257 = sand.u32 %s18, 1
          %s258 = scalar_lea.sflag [#allocation7], %s257
          %s259 = sand.u32 %s103, 1
          %s260 = smul.addr %s259, 2
          %s261 = scalar_lea.vmem [#allocation8], %s260
          %s262 = smul.u32 2, %s26
          %s264 = ssub.s32 32, 32
          %265 = vsyncadd %s258, %s264
          %s266 = smul.addr %s262, 16
          %s267 = scalar_lea.hbm %s2, %s266
          %s269 = sshll.u32 %s261, 4
          %s270 = int_to_ptr.vmem [resolvable:$true] %s269
          %272 = dma.hbm_to_vmem [thread:$0]  %s267, 32, %s270, %s258
        $region36: #{tpu_custom_call.1} parent=27 // pred_fallthru
          _
      $region28: #{tpu_custom_call.1} parent=5 // pred_fallthru
        _
      %p273 = scmp.le.s32.totalorder 1, %s18
      %p274 = scmp.lt.s32.totalorder %s18, 3
      %p275 = pnand %p273, %p274
      %p276 = pneg %p275
      // Predicated region
      $region37: #{tpu_custom_call.1} parent=5 // pred_check
        _
      $region38: #{tpu_custom_call.1} parent=5 // pred_check_branch
        %278 = sbr.rel (%p275) target = $region40
      $region39: #{tpu_custom_call.1} parent=5 // pred_region
        %s279 = ssub.s32 %s18, 1
        // Predicated region
        $region41: #{tpu_custom_call.1} parent=39 // pred_check
          %p280 = pneg %p65
        $region42: #{tpu_custom_call.1} parent=39 // pred_check_branch
          %282 = sbr.rel (%p280) target = $region44
        $region43: #{tpu_custom_call.1} parent=39 // pred_region
          %283 = dma.done [#allocation4], 256
        $region44: #{tpu_custom_call.1} parent=39 // pred_fallthru
          _
        %s284 = sand.u32 %s23, 1
        %s285 = scalar_lea.sflag [#allocation7], %s284
        %s286 = sand.u32 %s80, 1
        %s287 = smul.addr %s286, 512
        %s288 = scalar_lea.vmem [#allocation6], %s287
        // Predicated region
        $region45: #{tpu_custom_call.1} parent=39 // pred_check
          %p289 = pneg %p93
        $region46: #{tpu_custom_call.1} parent=39 // pred_check_branch
          %291 = sbr.rel (%p289) target = $region48
        $region47: #{tpu_custom_call.1} parent=39 // pred_region
          %292 = dma.done %s285, 8192
        $region48: #{tpu_custom_call.1} parent=39 // pred_fallthru
          _
        %s293 = sand.u32 %s23, 1
        %s294 = scalar_lea.sflag [#allocation7], %s293
        %s295 = sand.u32 %s106, 1
        %s296 = smul.addr %s295, 2
        %s297 = scalar_lea.vmem [#allocation8], %s296
        // Predicated region
        $region49: #{tpu_custom_call.1} parent=39 // pred_check
          %p298 = pneg %p119
        $region50: #{tpu_custom_call.1} parent=39 // pred_check_branch
          %300 = sbr.rel (%p298) target = $region52
        $region51: #{tpu_custom_call.1} parent=39 // pred_region
          %301 = dma.done %s294, 32
        $region52: #{tpu_custom_call.1} parent=39 // pred_fallthru
          _
        %p302 = pneg %p65
        %p303 = pneg %p62
        %s304 = sand.u32 %s23, 1
        %s305 = scalar_lea.sflag [#allocation7], %s304
        %s306 = sand.u32 %s80, 1
        %s307 = smul.addr %s306, 512
        %s308 = scalar_lea.vmem [#allocation6], %s307
        %p309 = pneg %p93
        %p310 = pneg %p90
        %s311 = sand.u32 %s23, 1
        %s312 = scalar_lea.sflag [#allocation7], %s311
        %s313 = sand.u32 %s106, 1
        %s314 = smul.addr %s313, 2
        %s315 = scalar_lea.vmem [#allocation8], %s314
        %p316 = pneg %p119
        %p317 = pneg %p116
        %p318 = pneg %p140
        %p319 = pneg %p137
        %p320 = pneg %p161
        %p321 = pneg %p158
        %p322 = pneg %p189
        %p323 = pneg %p186
        %s324 = sand.u32 %s176, 1
        %s325 = scalar_lea.sflag [#allocation5], %s324
        %s326 = sand.u32 %s176, 1
        %s327 = smul.addr %s326, 16
        %s328 = scalar_lea.vmem [#allocation9], %s327
        %s329 = smul.u32 2, %s30
        %s330 = smul.u32 32, %s30
        %s331 = smul.u32 2, %s29
        %s332 = smul.u32 2, %s29
        %s333 = smul.u32 2, %s29
        %p334 = scmp.eq.s32.totalorder %s30, 0
        // Predicated region
        $region53: #{tpu_custom_call.1} parent=39 // pred_check
          %p335 = pneg %p334
        $region54: #{tpu_custom_call.1} parent=39 // pred_check_branch
          %337 = sbr.rel (%p335) target = $region56
        $region55: #{tpu_custom_call.1} parent=39 // pred_region
          %338 = vst [vmem:[#allocation2] sm:$0xff] 0.0
          %339 = vst [vmem:[#allocation2 + $0x8] sm:$0xff] 0.0
        $region56: #{tpu_custom_call.1} parent=39 // pred_fallthru
          _
        %v340 = vld [vmem:[#allocation2] sm:$0xff]
        %v341 = vld [vmem:[#allocation2 + $0x8] sm:$0xff]
        %v342 = vld [vmem:[#allocation3] sm:$0xff]
        %v343 = vld [vmem:[#allocation3 + $0x8] sm:$0xff]
        %v344 = vld [vmem:[%s288] sm:$0xff]
        %v345 = vld [vmem:[%s288 + $0x8] sm:$0xff]
        %v346 = vld [vmem:[%s288 + $0x10] sm:$0xff]
        %v347 = vld [vmem:[%s288 + $0x18] sm:$0xff]
        %v348 = vld [vmem:[%s288 + $0x20] sm:$0xff]
        %v349 = vld [vmem:[%s288 + $0x28] sm:$0xff]
        %v350 = vld [vmem:[%s288 + $0x30] sm:$0xff]
        %v351 = vld [vmem:[%s288 + $0x38] sm:$0xff]
        %v352 = vld [vmem:[%s288 + $0x40] sm:$0xff]
        %v353 = vld [vmem:[%s288 + $0x48] sm:$0xff]
        %v354 = vld [vmem:[%s288 + $0x50] sm:$0xff]
        %v355 = vld [vmem:[%s288 + $0x58] sm:$0xff]
        %v356 = vld [vmem:[%s288 + $0x60] sm:$0xff]
        %v357 = vld [vmem:[%s288 + $0x68] sm:$0xff]
        %v358 = vld [vmem:[%s288 + $0x70] sm:$0xff]
        %v359 = vld [vmem:[%s288 + $0x78] sm:$0xff]
        %v360 = vld [vmem:[%s288 + $0x80] sm:$0xff]
        %v361 = vld [vmem:[%s288 + $0x88] sm:$0xff]
        %v362 = vld [vmem:[%s288 + $0x90] sm:$0xff]
        %v363 = vld [vmem:[%s288 + $0x98] sm:$0xff]
        %v364 = vld [vmem:[%s288 + $0xa0] sm:$0xff]
        %v365 = vld [vmem:[%s288 + $0xa8] sm:$0xff]
        %v366 = vld [vmem:[%s288 + $0xb0] sm:$0xff]
        %v367 = vld [vmem:[%s288 + $0xb8] sm:$0xff]
        %v368 = vld [vmem:[%s288 + $0xc0] sm:$0xff]
        %v369 = vld [vmem:[%s288 + $0xc8] sm:$0xff]
        %v370 = vld [vmem:[%s288 + $0xd0] sm:$0xff]
        %v371 = vld [vmem:[%s288 + $0xd8] sm:$0xff]
        %v372 = vld [vmem:[%s288 + $0xe0] sm:$0xff]
        %v373 = vld [vmem:[%s288 + $0xe8] sm:$0xff]
        %v374 = vld [vmem:[%s288 + $0xf0] sm:$0xff]
        %v375 = vld [vmem:[%s288 + $0xf8] sm:$0xff]
        %v376 = vld [vmem:[%s288 + $0x100] sm:$0xff]
        %v377 = vld [vmem:[%s288 + $0x108] sm:$0xff]
        %v378 = vld [vmem:[%s288 + $0x110] sm:$0xff]
        %v379 = vld [vmem:[%s288 + $0x118] sm:$0xff]
        %v380 = vld [vmem:[%s288 + $0x120] sm:$0xff]
        %v381 = vld [vmem:[%s288 + $0x128] sm:$0xff]
        %v382 = vld [vmem:[%s288 + $0x130] sm:$0xff]
        %v383 = vld [vmem:[%s288 + $0x138] sm:$0xff]
        %v384 = vld [vmem:[%s288 + $0x140] sm:$0xff]
        %v385 = vld [vmem:[%s288 + $0x148] sm:$0xff]
        %v386 = vld [vmem:[%s288 + $0x150] sm:$0xff]
        %v387 = vld [vmem:[%s288 + $0x158] sm:$0xff]
        %v388 = vld [vmem:[%s288 + $0x160] sm:$0xff]
        %v389 = vld [vmem:[%s288 + $0x168] sm:$0xff]
        %v390 = vld [vmem:[%s288 + $0x170] sm:$0xff]
        %v391 = vld [vmem:[%s288 + $0x178] sm:$0xff]
        %v392 = vld [vmem:[%s288 + $0x180] sm:$0xff]
        %v393 = vld [vmem:[%s288 + $0x188] sm:$0xff]
        %v394 = vld [vmem:[%s288 + $0x190] sm:$0xff]
        %v395 = vld [vmem:[%s288 + $0x198] sm:$0xff]
        %v396 = vld [vmem:[%s288 + $0x1a0] sm:$0xff]
        %v397 = vld [vmem:[%s288 + $0x1a8] sm:$0xff]
        %v398 = vld [vmem:[%s288 + $0x1b0] sm:$0xff]
        %v399 = vld [vmem:[%s288 + $0x1b8] sm:$0xff]
        %v400 = vld [vmem:[%s288 + $0x1c0] sm:$0xff]
        %v401 = vld [vmem:[%s288 + $0x1c8] sm:$0xff]
        %v402 = vld [vmem:[%s288 + $0x1d0] sm:$0xff]
        %v403 = vld [vmem:[%s288 + $0x1d8] sm:$0xff]
        %v404 = vld [vmem:[%s288 + $0x1e0] sm:$0xff]
        %v405 = vld [vmem:[%s288 + $0x1e8] sm:$0xff]
        %v406 = vld [vmem:[%s288 + $0x1f0] sm:$0xff]
        %v407 = vld [vmem:[%s288 + $0x1f8] sm:$0xff]
        %408 = vmatprep.subr.mxu0 %v375
        %409 = vmatpush1.msra.mxu0 %v374
        %410 = vmatprep.subr.mxu0 %v373
        %411 = vmatpush1.msra.mxu0 %v372
        %412 = vmatprep.subr.mxu0 %v371
        %413 = vmatpush1.msra.mxu0 %v370
        %414 = vmatprep.subr.mxu0 %v369
        %415 = vmatpush1.msra.mxu0 %v368
        %416 = vmatprep.subr.mxu0 %v367
        %417 = vmatpush1.msra.mxu0 %v366
        %418 = vmatprep.subr.mxu0 %v365
        %419 = vmatpush1.msra.mxu0 %v364
        %420 = vmatprep.subr.mxu0 %v363
        %421 = vmatpush1.msra.mxu0 %v362
        %422 = vmatprep.subr.mxu0 %v361
        %423 = vmatpush1.msra.mxu0 %v360
        %424 = vmatprep.subr.mxu0 %v359
        %425 = vmatpush1.msra.mxu0 %v358
        %426 = vmatprep.subr.mxu0 %v357
        %427 = vmatpush1.msra.mxu0 %v356
        %428 = vmatprep.subr.mxu0 %v355
        %429 = vmatpush1.msra.mxu0 %v354
        %430 = vmatprep.subr.mxu0 %v353
        %431 = vmatpush1.msra.mxu0 %v352
        %432 = vmatprep.subr.mxu0 %v351
        %433 = vmatpush1.msra.mxu0 %v350
        %434 = vmatprep.subr.mxu0 %v349
        %435 = vmatpush1.msra.mxu0 %v348
        %436 = vmatprep.subr.mxu0 %v347
        %437 = vmatpush1.msra.mxu0 %v346
        %438 = vmatprep.subr.mxu0 %v345
        %439 = vmatpush1.msra.mxu0 %v344
        %440 = vmatprep.subr.mxu0 %v407
        %441 = vmatpush2.msra.mxu0 %v406
        %442 = vmatprep.subr.mxu0 %v405
        %443 = vmatpush2.msra.mxu0 %v404
        %444 = vmatprep.subr.mxu0 %v403
        %445 = vmatpush2.msra.mxu0 %v402
        %446 = vmatprep.subr.mxu0 %v401
        %447 = vmatpush2.msra.mxu0 %v400
        %448 = vmatprep.subr.mxu0 %v399
        %449 = vmatpush2.msra.mxu0 %v398
        %450 = vmatprep.subr.mxu0 %v397
        %451 = vmatpush2.msra.mxu0 %v396
        %452 = vmatprep.subr.mxu0 %v395
        %453 = vmatpush2.msra.mxu0 %v394
        %454 = vmatprep.subr.mxu0 %v393
        %455 = vmatpush2.msra.mxu0 %v392
        %456 = vmatprep.subr.mxu0 %v391
        %457 = vmatpush2.msra.mxu0 %v390
        %458 = vmatprep.subr.mxu0 %v389
        %459 = vmatpush2.msra.mxu0 %v388
        %460 = vmatprep.subr.mxu0 %v387
        %461 = vmatpush2.msra.mxu0 %v386
        %462 = vmatprep.subr.mxu0 %v385
        %463 = vmatpush2.msra.mxu0 %v384
        %464 = vmatprep.subr.mxu0 %v383
        %465 = vmatpush2.msra.mxu0 %v382
        %466 = vmatprep.subr.mxu0 %v381
        %467 = vmatpush2.msra.mxu0 %v380
        %468 = vmatprep.subr.mxu0 %v379
        %469 = vmatpush2.msra.mxu0 %v378
        %470 = vmatprep.subr.mxu0 %v377
        %471 = vmatpush2.msra.mxu0 %v376
        %472 = vmatprep.mubr.f32.mxu0 %v343
        %473 = vmatmul.mubr.f32.gmra.mxu0 %v342
        %v474 = vpop.f32.mrf.mxu0
        %v475 = vadd.f32 0.0, %v474
        %v476 = vpop.f32.mrf.mxu0
        %v477 = vadd.f32 0.0, %v476
        %478 = vdwg.mxu0
        %v479 = vadd.f32 %v340, %v475
        %v480 = vadd.f32 %v341, %v477
        %481 = vst [vmem:[#allocation2] sm:$0xff] %v479
        %482 = vst [vmem:[#allocation2 + $0x8] sm:$0xff] %v480
        // Predicated region
        $region57: #{tpu_custom_call.1} parent=39 // pred_check
          %p483 = pneg %p334
        $region58: #{tpu_custom_call.1} parent=39 // pred_check_branch
          %485 = sbr.rel (%p483) target = $region60
        $region59: #{tpu_custom_call.1} parent=39 // pred_region
          %v486 = vld [vmem:[#allocation2] sm:$0xff]
          %v487 = vld [vmem:[#allocation2 + $0x8] sm:$0xff]
          %v488 = vld [vmem:[%s297] sm:$0x3]
          %v490 = vlaneseq
          %v491 = vshrl.u32 %v490, 7
          %v492 = vsub.s32 0, %v491
          %v493 = vrot.slane %v488, %v492
          %v494 = vlaneseq
          %v495 = vshrl.u32 %v494, 7
          %v496 = vsub.s32 1, %v495
          %v497 = vrot.slane %v488, %v496
          %v500 = vadd.f32 %v486, %v493
          %v501 = vadd.f32 %v487, %v497
          %v502 = vld [vmem:[%s3] sm:$0x1]
          %v503 = vld [vmem:[%s4] sm:$0x1]
          %504 = vadd.xlane.f32.xlu0 %v500
          %v505 = vpop.xlane.xlu0 %504
          %v506 = vrcp.pop 128.0
          %v507 = vmul.f32 %v505, %v506
          %v508 = vsub.f32 %v500, %v507
          %v509 = vmul.f32 %v508, %v508
          %510 = vadd.xlane.f32.xlu0 %v509
          %v511 = vpop.xlane.xlu0 %510
          %v512 = vmul.f32 %v511, %v506
          %v513 = vadd.f32 %v512, 1e-05
          %v514 = vrsqrt.pop %v513
          %v515 = vmul.f32 %v508, %v514
          %v517 = vlaneseq
          %v518 = vshrl.u32 %v517, 7
          %v519 = vsub.s32 0, %v518
          %v520 = vrot.slane %v502, %v519
          %v522 = vmul.f32 %v515, %v520
          %v524 = vlaneseq
          %v525 = vshrl.u32 %v524, 7
          %v526 = vsub.s32 0, %v525
          %v527 = vrot.slane %v503, %v526
          %v529 = vadd.f32 %v522, %v527
          %530 = vst [vmem:[%s328] sm:$0xff] %v529
          %531 = vadd.xlane.f32.xlu0 %v501
          %v532 = vpop.xlane.xlu0 %531
          %v533 = vmul.f32 %v532, %v506
          %v534 = vsub.f32 %v501, %v533
          %v535 = vmul.f32 %v534, %v534
          %536 = vadd.xlane.f32.xlu0 %v535
          %v537 = vpop.xlane.xlu0 %536
          %v538 = vmul.f32 %v537, %v506
          %v539 = vadd.f32 %v538, 1e-05
          %v540 = vrsqrt.pop %v539
          %v541 = vmul.f32 %v534, %v540
          %v542 = vmul.f32 %v541, %v520
          %v543 = vadd.f32 %v542, %v527
          %544 = vst [vmem:[%s328 + $0x8] sm:$0xff] %v543
        $region60: #{tpu_custom_call.1} parent=39 // pred_fallthru
          _
        %s545 = sand.u32 %s176, 1
        %s546 = scalar_lea.sflag [#allocation5], %s545
        %s547 = sand.u32 %s176, 1
        %s548 = smul.addr %s547, 16
        %s549 = scalar_lea.vmem [#allocation9], %s548
        // Predicated region
        $region61: #{tpu_custom_call.1} parent=39 // pred_check
          %p550 = pneg %p186
        $region62: #{tpu_custom_call.1} parent=39 // pred_check_branch
          %552 = sbr.rel (%p550) target = $region64
        $region63: #{tpu_custom_call.1} parent=39 // pred_region
          %s553 = smul.u32 2, %s29
          %s555 = ssub.s32 256, 256
          %556 = vsyncadd %s546, %s555
          %s557 = smul.addr %s28, 4
          %s558 = sadd.s32 %s553, %s557
          %s559 = smul.addr %s558, 128
          %s560 = scalar_lea.hbm %s5, %s559
          %s562 = sshll.u32 %s549, 4
          %s563 = int_to_ptr.vmem [resolvable:$true] %s562
          %565 = dma.vmem_to_hbm [thread:$0]  %s563, 256, %s560, %s546
        $region64: #{tpu_custom_call.1} parent=39 // pred_fallthru
          _
      $region40: #{tpu_custom_call.1} parent=5 // pred_fallthru
        _
      %p566 = scmp.le.s32.totalorder 2, %s18
      // Predicated region
      $region65: #{tpu_custom_call.1} parent=5 // pred_check
        %p567 = pneg %p566
      $region66: #{tpu_custom_call.1} parent=5 // pred_check_branch
        %569 = sbr.rel (%p567) target = $region68
      $region67: #{tpu_custom_call.1} parent=5 // pred_region
        %s570 = ssub.s32 %s18, 2
        // Predicated region
        $region69: #{tpu_custom_call.1} parent=67 // pred_check
          %p571 = pneg %p192
        $region70: #{tpu_custom_call.1} parent=67 // pred_check_branch
          %573 = sbr.rel (%p571) target = $region72
        $region71: #{tpu_custom_call.1} parent=67 // pred_region
          %s574 = sand.u32 %s177, 1
          %s575 = scalar_lea.sflag [#allocation5], %s574
          %s576 = sand.u32 %s177, 1
          %s577 = smul.addr %s576, 16
          %s578 = scalar_lea.vmem [#allocation9], %s577
          %579 = dma.done %s575, 256
        $region72: #{tpu_custom_call.1} parent=67 // pred_fallthru
          _
      $region68: #{tpu_custom_call.1} parent=5 // pred_fallthru
        _
    $region6: #{tpu_custom_call.1} parent=1 // loop_footer
      %s22 = sadd.s32 1, %s18
    $region7: #{tpu_custom_call.1} parent=1 // loop_footer_branch
      %17 = sbr.rel target = $region3
    $region8: #{tpu_custom_call.1} parent=1 // loop_exit
      _
    %580 = vsyncpa [#allocation4], 1
    %s581 = scalar_lea.sflag [#allocation4], 1
    %582 = vsyncpa %s581, 1
    %583 = vsyncpa [#allocation7], 1
    %s584 = scalar_lea.sflag [#allocation7], 1
    %585 = vsyncpa %s584, 1
    %586 = vsyncpa [#allocation5], 1
    %s587 = scalar_lea.sflag [#allocation5], 1
    %588 = vsyncpa %s587, 1

</llo_original>
